<compile_context>
chip_gen: v7x
topology: tpu7x:2x2x1
jax: 0.10.0
libtpu: 0.0.40
codegen_flags: <defaults>
</compile_context>

<pallas_src>
import jax
import jax.numpy as jnp
from jax.experimental import pallas as pl
from jax.experimental.pallas import tpu as pltpu


def _born_kernel_single_k(x_ref, w_ref, o_ref):
    """One (tm, tn) output tile; whole K reduction done in a single step.

    w_ref has block shape (2, K, tn): w_ref[0] = real weights, w_ref[1] = imag.
    """
    x = x_ref[...]
    r = jnp.dot(x, w_ref[0], preferred_element_type=jnp.float32)
    im = jnp.dot(x, w_ref[1], preferred_element_type=jnp.float32)
    o_ref[...] = (r * r + im * im).astype(o_ref.dtype)


def _born_kernel_k_reduce(x_ref, w_ref, o_ref, acc_i_ref):
    """Large-K fallback: loop over the K grid axis (innermost).

    Real part accumulates directly into the resident output block (f32);
    imaginary part accumulates in one VMEM scratch. Squaring happens once,
    on the last K step.
    """
    k = pl.program_id(2)

    @pl.when(k == 0)
    def _():
        o_ref[...] = jnp.zeros_like(o_ref)
        acc_i_ref[...] = jnp.zeros_like(acc_i_ref)

    x = x_ref[...]
    o_ref[...] += jnp.dot(x, w_ref[0], preferred_element_type=jnp.float32)
    acc_i_ref[...] += jnp.dot(x, w_ref[1], preferred_element_type=jnp.float32)

    @pl.when(k == pl.num_programs(2) - 1)
    def _():
        r = o_ref[...]
        im = acc_i_ref[...]
        o_ref[...] = (r * r + im * im).astype(o_ref.dtype)


def _round_up(a, b):
    return ((a + b - 1) // b) * b


def logits_born_forward(x, weight, *, tm=None, tn=None, tk=None):
    """x: (M, K); weight: (2, K, N) -> (M, N) f32 = |x @ (W_r + i*W_i)|^2."""
    M, K = x.shape
    two, K2, N = weight.shape
    assert two == 2 and K2 == K

    # ---- tile selection (safe on v5e / v6e / v7x VMEM budgets) -------------
    # tm: fill the MXU rows (128) when the batch allows it; multiple of 8.
    if tm is None:
        tm = min(128, _round_up(M, 8))
    # tn: lane-dense; use the full N when small, else a large multiple of 128.
    if tn is None:
        tn = N if N <= 512 else 512
    # tk: collapse the reduction grid axis entirely when K fits in one tile.
    if tk is None:
        tk = K if K <= 1024 else 512

    M_pad = _round_up(M, tm)
    N_pad = N if tn == N else _round_up(N, tn)
    K_pad = K if tk == K else _round_up(K, tk)

    if (M_pad, K_pad) != (M, K):
        x = jnp.pad(x, ((0, M_pad - M), (0, K_pad - K)))
    if (K_pad, N_pad) != (K, N):
        weight = jnp.pad(weight, ((0, 0), (0, K_pad - K), (0, N_pad - N)))

    n_k = K_pad // tk
    n_i = M_pad // tm
    n_j = N_pad // tn

    if n_k == 1:
        # Pick the grid ordering that minimizes HBM traffic.
        #  order A (i outer, j inner): weight re-streamed n_i times, x once.
        #  order B (j outer, i inner): x re-streamed n_j times, weight once.
        w_bytes = 2 * K_pad * N_pad * weight.dtype.itemsize
        x_bytes = M_pad * K_pad * x.dtype.itemsize
        cost_a = n_i * w_bytes + x_bytes
        cost_b = n_j * x_bytes + w_bytes
        if cost_a <= cost_b:
            grid = (n_i, n_j)
            x_map = lambda i, j: (i, 0)
            w_map = lambda i, j: (0, 0, j)
            o_map = lambda i, j: (i, j)
        else:
            grid = (n_j, n_i)
            x_map = lambda j, i: (i, 0)
            w_map = lambda j, i: (0, 0, j)
            o_map = lambda j, i: (i, j)

        out = pl.pallas_call(
            _born_kernel_single_k,
            out_shape=jax.ShapeDtypeStruct((M_pad, N_pad), jnp.float32),
            grid_spec=pltpu.PrefetchScalarGridSpec(
                num_scalar_prefetch=0,
                grid=grid,
                in_specs=[
                    pl.BlockSpec((tm, K_pad), x_map),        # x
                    pl.BlockSpec((2, K_pad, tn), w_map),     # W (both channels)
                ],
                out_specs=pl.BlockSpec((tm, tn), o_map),
            ),
            compiler_params=pltpu.CompilerParams(
                dimension_semantics=("parallel", "parallel")
            ),
        )(x, weight)
    else:
        out = pl.pallas_call(
            _born_kernel_k_reduce,
            out_shape=jax.ShapeDtypeStruct((M_pad, N_pad), jnp.float32),
            grid_spec=pltpu.PrefetchScalarGridSpec(
                num_scalar_prefetch=0,
                grid=(n_i, n_j, n_k),
                in_specs=[
                    pl.BlockSpec((tm, tk), lambda i, j, k: (i, k)),        # x
                    pl.BlockSpec((2, tk, tn), lambda i, j, k: (0, k, j)),  # W
                ],
                out_specs=pl.BlockSpec((tm, tn), lambda i, j, k: (i, j)),
                scratch_shapes=[pltpu.VMEM((tm, tn), jnp.float32)],  # acc_imag
            ),
            compiler_params=pltpu.CompilerParams(
                dimension_semantics=("parallel", "parallel", "arbitrary")
            ),
        )(x, weight)

    if (M_pad, N_pad) != (M, N):
        out = out[:M, :N]
    return out


def _reference(x, weight):
    real = x @ weight[0]
    imag = x @ weight[1]
    return real**2 + imag**2


if __name__ == "__main__":
    key = jax.random.PRNGKey(0)
    k1, k2, k3, k4, k5, k6 = jax.random.split(key, 6)

    # --- Test 1: module-consistent small shapes (single-K-step fast path) ---
    batch, in_features, out_features = 8, 64, 256
    x = jax.random.normal(k1, (batch, in_features), dtype=jnp.float32)
    weight = jax.random.normal(
        k2, (2, in_features, out_features), dtype=jnp.float32
    ) / jnp.sqrt(jnp.float32(in_features))

    out = jax.block_until_ready(logits_born_forward(x, weight))
    ref = _reference(x, weight)
    assert out.shape == (batch, out_features)
    assert jnp.allclose(out, ref, rtol=1e-4, atol=1e-4)

    # --- Test 2: exercise the K-reduction fallback path (still small) -------
    b2, in2, out2 = 8, 256, 384
    x2 = jax.random.normal(k3, (b2, in2), dtype=jnp.float32)
    w2 = jax.random.normal(k4, (2, in2, out2), dtype=jnp.float32) / jnp.sqrt(
        jnp.float32(in2)
    )
    out_b = jax.block_until_ready(logits_born_forward(x2, w2, tk=128))
    ref_b = _reference(x2, w2)
    assert out_b.shape == (b2, out2)
    assert jnp.allclose(out_b, ref_b, rtol=1e-4, atol=1e-4)

    # --- Test 3: ragged M (padding) + weight-stationary grid ordering -------
    b3, in3, out3 = 272, 32, 128
    x3 = jax.random.normal(k5, (b3, in3), dtype=jnp.float32)
    w3 = jax.random.normal(k6, (2, in3, out3), dtype=jnp.float32) / jnp.sqrt(
        jnp.float32(in3)
    )
    out_c = jax.block_until_ready(logits_born_forward(x3, w3))
    ref_c = _reference(x3, w3)
    assert out_c.shape == (b3, out3)
    assert jnp.allclose(out_c, ref_c, rtol=1e-4, atol=1e-4)

    print("KERNEL_OK")
</pallas_src>

<mosaic_0001>
module attributes {stable_mosaic.version = 11 : i64} {
  func.func @_born_kernel_single_k(%arg0: i32, %arg1: i32, %arg2: memref<8x64xf32, #tpu.memory_space<vmem>>, %arg3: memref<2x64x256xf32, #tpu.memory_space<vmem>>, %arg4: memref<8x256xf32, #tpu.memory_space<vmem>>) attributes {dimension_semantics = [#tpu.dimension_semantics<parallel>, #tpu.dimension_semantics<parallel>], iteration_bounds = array<i64: 1, 1>, scalar_prefetch = 0 : i64, scratch_operands = 0 : i64, tpu.core_type = #tpu.core_type<tc>, window_params = [{transform_indices = @transform_0, window_bounds = array<i64: 8, 64>}, {transform_indices = @transform_1, window_bounds = array<i64: 2, 64, 256>}, {transform_indices = @transform_2, window_bounds = array<i64: 8, 256>}]} {
    %c0 = arith.constant 0 : index
    %c0_0 = arith.constant 0 : index
    %0 = vector.load %arg2[%c0, %c0_0] : memref<8x64xf32, #tpu.memory_space<vmem>>, vector<8x64xf32>
    %c0_1 = arith.constant 0 : index
    %c0_2 = arith.constant 0 : index
    %c0_3 = arith.constant 0 : index
    %1 = vector.load %arg3[%c0_1, %c0_2, %c0_3] : memref<2x64x256xf32, #tpu.memory_space<vmem>>, vector<1x64x256xf32>
    %2 = vector.shape_cast %1 : vector<1x64x256xf32> to vector<64x256xf32>
    %cst = arith.constant dense<0.000000e+00> : vector<8x256xf32>
    %3 = tpu.matmul %0, %2, %cst {dimension_numbers = #tpu.dot_dimension_numbers<[1], [0], [0], [1], [0, 0, 1, 1], [], []>} : vector<8x64xf32>, vector<64x256xf32>, vector<8x256xf32> -> vector<8x256xf32>
    %c1 = arith.constant 1 : index
    %c0_4 = arith.constant 0 : index
    %c0_5 = arith.constant 0 : index
    %4 = vector.load %arg3[%c1, %c0_4, %c0_5] : memref<2x64x256xf32, #tpu.memory_space<vmem>>, vector<1x64x256xf32>
    %5 = vector.shape_cast %4 : vector<1x64x256xf32> to vector<64x256xf32>
    %cst_6 = arith.constant dense<0.000000e+00> : vector<8x256xf32>
    %6 = tpu.matmul %0, %5, %cst_6 {dimension_numbers = #tpu.dot_dimension_numbers<[1], [0], [0], [1], [0, 0, 1, 1], [], []>} : vector<8x64xf32>, vector<64x256xf32>, vector<8x256xf32> -> vector<8x256xf32>
    %7 = arith.mulf %3, %3 : vector<8x256xf32>
    %8 = arith.mulf %6, %6 : vector<8x256xf32>
    %9 = arith.addf %7, %8 : vector<8x256xf32>
    %c0_7 = arith.constant 0 : index
    %c0_8 = arith.constant 0 : index
    %10 = vector.load %arg4[%c0_7, %c0_8] : memref<8x256xf32, #tpu.memory_space<vmem>>, vector<8x256xf32>
    tpu.vector_store %arg4[%c0_7, %c0_8], %9 {strides = array<i32>} : memref<8x256xf32, #tpu.memory_space<vmem>>, vector<8x256xf32>,
    return
  }
  func.func @transform_0(%arg0: i32, %arg1: i32) -> (i32, i32) {
    %c0_i32 = arith.constant 0 : i32
    %c0_i32_0 = arith.constant 0 : i32
    return %arg0, %c0_i32 : i32, i32
  }
  func.func @transform_1(%arg0: i32, %arg1: i32) -> (i32, i32, i32) {
    %c0_i32 = arith.constant 0 : i32
    %c0_i32_0 = arith.constant 0 : i32
    %c0_i32_1 = arith.constant 0 : i32
    return %c0_i32, %c0_i32_0, %arg1 : i32, i32, i32
  }
  func.func @transform_2(%arg0: i32, %arg1: i32) -> (i32, i32) {
    %c0_i32 = arith.constant 0 : i32
    return %arg0, %arg1 : i32, i32
  }
}

</mosaic_0001>

<llo_original>
// kernel: tpu_custom_call.1
$region0: #{tpu_custom_call.1}
  #allocation0 [shape = 'u32[]', space=smem, size = 0x4, offset = 0x4, fixed_abs, tag = 'smem constant byte address 0x4 - core index']
  #allocation1 [shape = 'u32[144,128]{1,0:T(1,128)}', space=vmem, size = 0x12000, scoped, tag = 'internal scratch']
  %s0 = inlined_call_operand.hbm [shape: f32[8,64], index: 0, kind: input, shape index: {}]
  %s1 = inlined_call_operand.hbm [shape: f32[2,64,256], index: 1, kind: input, shape index: {}]
  %s2 = inlined_call_operand.hbm [shape: f32[8,256], index: 2, kind: output, shape index: {}]
  %s3 = sld [smem:[#allocation0]]
  $region26: #{tpu_custom_call.1} parent=0
    _
  %s5 = ssub.s32 1, %s3
  %s6 = scalar_select 0, %s5, %s3
  $region1: #{tpu_custom_call.1} parent=0
    #allocation2 [shape = 'u8[4096]{0}', space=vmem, size = 0x1000, scoped, tag = 'input window, operand 0, single buffered']
    #allocation3 [shape = 's32[1]{0}', space=sflag, size = 0x4, scoped, tag = 'scoped memory for tpu_custom_call.1']
    #allocation4 [shape = 's32[1]{0}', space=sflag, size = 0x4, scoped, tag = 'scoped memory for tpu_custom_call.1']
    #allocation5 [shape = 'u8[131072]{0}', space=vmem, size = 0x20000, scoped, tag = 'input window, operand 1, single buffered']
    #allocation6 [shape = 's32[1]{0}', space=sflag, size = 0x4, scoped, tag = 'scoped memory for tpu_custom_call.1']
    #allocation7 [shape = 'u8[8192]{0}', space=vmem, size = 0x2000, scoped, tag = 'output window, operand 0, single buffered']
    %7 = vsyncpa [#allocation3], 0
    %8 = vsyncpa [#allocation6], 0
    %9 = vsyncpa [#allocation4], 0
    // Predicated region
    $region2: #{tpu_custom_call.1} parent=1 // pred_check
      _
    $region3: #{tpu_custom_call.1} parent=1 // pred_check_branch
      %11 = sbr.rel (0) target = $region5
    $region4: #{tpu_custom_call.1} parent=1 // pred_region
      %s13 = ssub.s32 128, 128
      %14 = vsyncadd [#allocation3], %s13
      %s16 = sshll.u32 [#allocation2], 4
      %s17 = int_to_ptr.vmem [resolvable:$true] %s16
      %19 = dma.hbm_to_vmem [thread:$0]  %s0, 128, %s17, [#allocation3]
    $region5: #{tpu_custom_call.1} parent=1 // pred_fallthru
      _
    // Predicated region
    $region6: #{tpu_custom_call.1} parent=1 // pred_check
      _
    $region7: #{tpu_custom_call.1} parent=1 // pred_check_branch
      %21 = sbr.rel (0) target = $region9
    $region8: #{tpu_custom_call.1} parent=1 // pred_region
      %s23 = ssub.s32 4096, 4096
      %24 = vsyncadd [#allocation6], %s23
      %s25 = sshll.u32 [#allocation5], 4
      %s26 = int_to_ptr.vmem [resolvable:$true] %s25
      %31 = dma.hbm_to_vmem [thread:$0]  %s1, 4096, %s26, [#allocation6], 256, 256, 16
    $region9: #{tpu_custom_call.1} parent=1 // pred_fallthru
      _
    // Predicated region
    $region10: #{tpu_custom_call.1} parent=1 // pred_check
      _
    $region11: #{tpu_custom_call.1} parent=1 // pred_check_branch
      %33 = sbr.rel (0) target = $region13
    $region12: #{tpu_custom_call.1} parent=1 // pred_region
      %34 = dma.done [#allocation3], 128
    $region13: #{tpu_custom_call.1} parent=1 // pred_fallthru
      _
    // Predicated region
    $region14: #{tpu_custom_call.1} parent=1 // pred_check
      _
    $region15: #{tpu_custom_call.1} parent=1 // pred_check_branch
      %36 = sbr.rel (0) target = $region17
    $region16: #{tpu_custom_call.1} parent=1 // pred_region
      %37 = dma.done [#allocation6], 4096
    $region17: #{tpu_custom_call.1} parent=1 // pred_fallthru
      _
    %v38 = vld [vmem:[#allocation2] sm:$0xff]
    %v39 = vld [vmem:[#allocation5] sm:$0xff]
    %v40 = vld [vmem:[#allocation5 + $0x8] sm:$0xff]
    %v41 = vld [vmem:[#allocation5 + $0x10] sm:$0xff]
    %v42 = vld [vmem:[#allocation5 + $0x18] sm:$0xff]
    %v43 = vld [vmem:[#allocation5 + $0x20] sm:$0xff]
    %v44 = vld [vmem:[#allocation5 + $0x28] sm:$0xff]
    %v45 = vld [vmem:[#allocation5 + $0x30] sm:$0xff]
    %v46 = vld [vmem:[#allocation5 + $0x38] sm:$0xff]
    %v47 = vld [vmem:[#allocation5 + $0x40] sm:$0xff]
    %v48 = vld [vmem:[#allocation5 + $0x48] sm:$0xff]
    %v49 = vld [vmem:[#allocation5 + $0x50] sm:$0xff]
    %v50 = vld [vmem:[#allocation5 + $0x58] sm:$0xff]
    %v51 = vld [vmem:[#allocation5 + $0x60] sm:$0xff]
    %v52 = vld [vmem:[#allocation5 + $0x68] sm:$0xff]
    %v53 = vld [vmem:[#allocation5 + $0x70] sm:$0xff]
    %v54 = vld [vmem:[#allocation5 + $0x78] sm:$0xff]
    %vm55 = vcmask 523264
    %v57 = vsel %vm55, %v38, 0
    %59 = vmatprep.subr.mxu0 %v40
    %60 = vmatpush1.msra.mxu0 %v39
    %61 = vmatprep.subr.mxu0 %v42
    %62 = vmatpush1.msra.mxu0 %v41
    %63 = vmatprep.subr.mxu0 %v44
    %64 = vmatpush1.msra.mxu0 %v43
    %65 = vmatprep.subr.mxu0 %v46
    %66 = vmatpush1.msra.mxu0 %v45
    %67 = vmatprep.subr.mxu0 %v48
    %68 = vmatpush1.msra.mxu0 %v47
    %69 = vmatprep.subr.mxu0 %v50
    %70 = vmatpush1.msra.mxu0 %v49
    %71 = vmatprep.subr.mxu0 %v52
    %72 = vmatpush1.msra.mxu0 %v51
    %73 = vmatprep.subr.mxu0 %v54
    %74 = vmatpush1.msra.mxu0 %v53
    %75 = vmatprep.subr.mxu0 0.0
    %76 = vmatpush1.msra.mxu0 0.0
    %77 = vmatprep.subr.mxu0 0.0
    %78 = vmatpush1.msra.mxu0 0.0
    %79 = vmatprep.subr.mxu0 0.0
    %80 = vmatpush1.msra.mxu0 0.0
    %81 = vmatprep.subr.mxu0 0.0
    %82 = vmatpush1.msra.mxu0 0.0
    %83 = vmatprep.subr.mxu0 0.0
    %84 = vmatpush1.msra.mxu0 0.0
    %85 = vmatprep.subr.mxu0 0.0
    %86 = vmatpush1.msra.mxu0 0.0
    %87 = vmatprep.subr.mxu0 0.0
    %88 = vmatpush1.msra.mxu0 0.0
    %89 = vmatprep.subr.mxu0 0.0
    %90 = vmatpush1.msra.mxu0 0.0
    %91 = vmatprep.subr.mxu0 0.0
    %92 = vmatpush1.msra.mxu0 0.0
    %93 = vmatprep.subr.mxu0 0.0
    %94 = vmatpush1.msra.mxu0 0.0
    %95 = vmatprep.subr.mxu0 0.0
    %96 = vmatpush1.msra.mxu0 0.0
    %97 = vmatprep.subr.mxu0 0.0
    %98 = vmatpush1.msra.mxu0 0.0
    %99 = vmatprep.subr.mxu0 0.0
    %100 = vmatpush1.msra.mxu0 0.0
    %101 = vmatprep.subr.mxu0 0.0
    %102 = vmatpush1.msra.mxu0 0.0
    %103 = vmatprep.subr.mxu0 0.0
    %104 = vmatpush1.msra.mxu0 0.0
    %105 = vmatprep.subr.mxu0 0.0
    %106 = vmatpush1.msra.mxu0 0.0
    %107 = vmatprep.subr.mxu0 0.0
    %108 = vmatpush1.msra.mxu0 0.0
    %109 = vmatprep.subr.mxu0 0.0
    %110 = vmatpush1.msra.mxu0 0.0
    %111 = vmatprep.subr.mxu0 0.0
    %112 = vmatpush1.msra.mxu0 0.0
    %113 = vmatprep.subr.mxu0 0.0
    %114 = vmatpush1.msra.mxu0 0.0
    %115 = vmatprep.subr.mxu0 0.0
    %116 = vmatpush1.msra.mxu0 0.0
    %117 = vmatprep.subr.mxu0 0.0
    %118 = vmatpush1.msra.mxu0 0.0
    %119 = vmatprep.subr.mxu0 0.0
    %120 = vmatpush1.msra.mxu0 0.0
    %121 = vmatprep.subr.mxu0 0.0
    %122 = vmatpush1.msra.mxu0 0.0
    %123 = vmatprep.mubr.f32.mxu0 0.0
    %124 = vmatmul.mubr.f32.gmra.mrb[0].mxu0 %v57
    %v125 = vpop.f32.mrb[0].mxu0
    %v126 = vadd.f32 0.0, %v125
    %v127 = vpop.f32.mrb[0].mxu0
    %v128 = vadd.f32 0.0, %v127
    %129 = vdwg.mxu0
    %s130 = scalar_lea.vmem [#allocation5], 128
    %v131 = vld [vmem:[%s130] sm:$0xff]
    %v132 = vld [vmem:[%s130 + $0x8] sm:$0xff]
    %v133 = vld [vmem:[%s130 + $0x10] sm:$0xff]
    %v134 = vld [vmem:[%s130 + $0x18] sm:$0xff]
    %v135 = vld [vmem:[%s130 + $0x20] sm:$0xff]
    %v136 = vld [vmem:[%s130 + $0x28] sm:$0xff]
    %v137 = vld [vmem:[%s130 + $0x30] sm:$0xff]
    %v138 = vld [vmem:[%s130 + $0x38] sm:$0xff]
    %v139 = vld [vmem:[%s130 + $0x40] sm:$0xff]
    %v140 = vld [vmem:[%s130 + $0x48] sm:$0xff]
    %v141 = vld [vmem:[%s130 + $0x50] sm:$0xff]
    %v142 = vld [vmem:[%s130 + $0x58] sm:$0xff]
    %v143 = vld [vmem:[%s130 + $0x60] sm:$0xff]
    %v144 = vld [vmem:[%s130 + $0x68] sm:$0xff]
    %v145 = vld [vmem:[%s130 + $0x70] sm:$0xff]
    %v146 = vld [vmem:[%s130 + $0x78] sm:$0xff]
    %147 = vmatprep.subr.mxu0 %v132
    %148 = vmatpush1.msra.mxu0 %v131
    %149 = vmatprep.subr.mxu0 %v134
    %150 = vmatpush1.msra.mxu0 %v133
    %151 = vmatprep.subr.mxu0 %v136
    %152 = vmatpush1.msra.mxu0 %v135
    %153 = vmatprep.subr.mxu0 %v138
    %154 = vmatpush1.msra.mxu0 %v137
    %155 = vmatprep.subr.mxu0 %v140
    %156 = vmatpush1.msra.mxu0 %v139
    %157 = vmatprep.subr.mxu0 %v142
    %158 = vmatpush1.msra.mxu0 %v141
    %159 = vmatprep.subr.mxu0 %v144
    %160 = vmatpush1.msra.mxu0 %v143
    %161 = vmatprep.subr.mxu0 %v146
    %162 = vmatpush1.msra.mxu0 %v145
    %163 = vmatprep.subr.mxu0 0.0
    %164 = vmatpush1.msra.mxu0 0.0
    %165 = vmatprep.subr.mxu0 0.0
    %166 = vmatpush1.msra.mxu0 0.0
    %167 = vmatprep.subr.mxu0 0.0
    %168 = vmatpush1.msra.mxu0 0.0
    %169 = vmatprep.subr.mxu0 0.0
    %170 = vmatpush1.msra.mxu0 0.0
    %171 = vmatprep.subr.mxu0 0.0
    %172 = vmatpush1.msra.mxu0 0.0
    %173 = vmatprep.subr.mxu0 0.0
    %174 = vmatpush1.msra.mxu0 0.0
    %175 = vmatprep.subr.mxu0 0.0
    %176 = vmatpush1.msra.mxu0 0.0
    %177 = vmatprep.subr.mxu0 0.0
    %178 = vmatpush1.msra.mxu0 0.0
    %179 = vmatprep.subr.mxu0 0.0
    %180 = vmatpush1.msra.mxu0 0.0
    %181 = vmatprep.subr.mxu0 0.0
    %182 = vmatpush1.msra.mxu0 0.0
    %183 = vmatprep.subr.mxu0 0.0
    %184 = vmatpush1.msra.mxu0 0.0
    %185 = vmatprep.subr.mxu0 0.0
    %186 = vmatpush1.msra.mxu0 0.0
    %187 = vmatprep.subr.mxu0 0.0
    %188 = vmatpush1.msra.mxu0 0.0
    %189 = vmatprep.subr.mxu0 0.0
    %190 = vmatpush1.msra.mxu0 0.0
    %191 = vmatprep.subr.mxu0 0.0
    %192 = vmatpush1.msra.mxu0 0.0
    %193 = vmatprep.subr.mxu0 0.0
    %194 = vmatpush1.msra.mxu0 0.0
    %195 = vmatprep.subr.mxu0 0.0
    %196 = vmatpush1.msra.mxu0 0.0
    %197 = vmatprep.subr.mxu0 0.0
    %198 = vmatpush1.msra.mxu0 0.0
    %199 = vmatprep.subr.mxu0 0.0
    %200 = vmatpush1.msra.mxu0 0.0
    %201 = vmatprep.subr.mxu0 0.0
    %202 = vmatpush1.msra.mxu0 0.0
    %203 = vmatprep.subr.mxu0 0.0
    %204 = vmatpush1.msra.mxu0 0.0
    %205 = vmatprep.subr.mxu0 0.0
    %206 = vmatpush1.msra.mxu0 0.0
    %207 = vmatprep.subr.mxu0 0.0
    %208 = vmatpush1.msra.mxu0 0.0
    %209 = vmatprep.subr.mxu0 0.0
    %210 = vmatpush1.msra.mxu0 0.0
    %211 = vmatprep.mubr.f32.mxu0 0.0
    %212 = vmatmul.mubr.f32.gmra.mrb[0].mxu0 %v57
    %v213 = vpop.f32.mrb[0].mxu0
    %v214 = vadd.f32 0.0, %v213
    %v215 = vpop.f32.mrb[0].mxu0
    %v216 = vadd.f32 0.0, %v215
    %217 = vdwg.mxu0
    %v218 = vmul.f32 %v126, %v126
    %v219 = vmul.f32 %v128, %v128
    %v220 = vmul.f32 %v214, %v214
    %v221 = vmul.f32 %v216, %v216
    %v222 = vadd.f32 %v218, %v220
    %v223 = vadd.f32 %v219, %v221
    %224 = vst [vmem:[#allocation7] sm:$0xff] %v222
    %225 = vst [vmem:[#allocation7 + $0x8] sm:$0xff] %v223
    // Predicated region
    $region18: #{tpu_custom_call.1} parent=1 // pred_check
      _
    $region19: #{tpu_custom_call.1} parent=1 // pred_check_branch
      %227 = sbr.rel (0) target = $region21
    $region20: #{tpu_custom_call.1} parent=1 // pred_region
      %s229 = ssub.s32 256, 256
      %230 = vsyncadd [#allocation4], %s229
      %s232 = sshll.u32 [#allocation7], 4
      %s233 = int_to_ptr.vmem [resolvable:$true] %s232
      %235 = dma.vmem_to_hbm [thread:$0]  %s233, 256, %s2, [#allocation4]
    $region21: #{tpu_custom_call.1} parent=1 // pred_fallthru
      _
    // Predicated region
    $region22: #{tpu_custom_call.1} parent=1 // pred_check
      _
    $region23: #{tpu_custom_call.1} parent=1 // pred_check_branch
      %237 = sbr.rel (0) target = $region25
    $region24: #{tpu_custom_call.1} parent=1 // pred_region
      %238 = dma.done [#allocation4], 256
    $region25: #{tpu_custom_call.1} parent=1 // pred_fallthru
      _
    %239 = vsyncpa [#allocation3], 1
    %240 = vsyncpa [#allocation6], 1
    %241 = vsyncpa [#allocation4], 1

</llo_original>
